<compile_context>
chip_gen: v5e
topology: v5e:2x2
jax: 0.10.0
libtpu: 0.0.40
codegen_flags: <defaults>
</compile_context>

<pallas_src>
import functools
import math

import jax
import jax.numpy as jnp
from jax.experimental import pallas as pl
from jax.experimental.pallas import tpu as pltpu

EPS = 1e-10
_HALF_LOG_2PI = 0.5 * math.log(2.0 * math.pi)

# ---------------------------------------------------------------------------
# lgamma helpers
# ---------------------------------------------------------------------------
# Lanczos approximation (g=7, n=9) for lgamma(z): only used for
# lgamma(disp + eps), whose argument can be arbitrarily close to zero.
_LANCZOS_G = 7.0
_LANCZOS = (
    0.99999999999980993,
    676.5203681218851,
    -1259.1392167224028,
    771.32342877765313,
    -176.61502916214059,
    12.507343278686905,
    -0.13857109526572012,
    9.9843695780195716e-6,
    1.5056327351493116e-7,
)
# Pairwise-combined partial fractions: c1/(z+i1) + c2/(z+i2)
#   = (c1*(z+i2) + c2*(z+i1)) / ((z+i1)*(z+i2))
_PAIRS = tuple(
    (_LANCZOS[2 * k - 1], float(2 * k - 1), _LANCZOS[2 * k], float(2 * k))
    for k in (1, 2, 3, 4)
)


def _lanczos_lgamma_zz(zz):
    """lgamma(zz + 1) for zz >= -0.5 (Lanczos g=7, n=9, pairwise fractions).

    EUP cost: 4 full-precision divides + 2 logs.  Full divides are kept here:
    the large alternating Lanczos coefficients cancel, so approx reciprocals
    would amplify the ~2^-12 vrcp error.
    """
    s = jnp.full_like(zz, _LANCZOS[0])
    for c1, i1, c2, i2 in _PAIRS:
        d1 = zz + i1
        d2 = zz + i2
        s = s + (c1 * d2 + c2 * d1) / (d1 * d2)
    t = zz + _LANCZOS_G + 0.5
    return _HALF_LOG_2PI + (zz + 0.5) * jnp.log(t) - t + jnp.log(s)


def _lgamma_pos(z, log_z):
    """lgamma for strictly positive z (small z via the recurrence).

    `log_z` must be log(z), already computed by the caller, so the small-z
    branch costs no extra EUP log.
    """
    small = z < 0.5
    zz = jnp.where(small, z, z - 1.0)   # shift small z into the stable region
    lg = _lanczos_lgamma_zz(zz)         # == lgamma(z+1) (small) or lgamma(z)
    return jnp.where(small, lg - log_z, lg)   # lgamma(z) = lgamma(z+1) - log(z)


def _stirling_lgamma(z):
    """lgamma(z) for z >= ~1 via a 3-term Stirling series.

    EUP cost: 1 log + 1 approx reciprocal (the correction series is tiny, so
    the ~2^-12 vrcp error is damped).  Abs error <~ 3e-4 at z = 1 and
    <~ 4e-6 for z >= 2; live lanes (integer counts >= 1) hit z >= 1 + disp.
    """
    inv = pl.reciprocal(z, approx=True)
    inv2 = inv * inv
    series = inv * (1.0 / 12.0 + inv2 * (-1.0 / 360.0 + inv2 * (1.0 / 1260.0)))
    return (z - 0.5) * jnp.log(z) - z + _HALF_LOG_2PI + series


# ---------------------------------------------------------------------------
# Kernel
# ---------------------------------------------------------------------------
def _zinb_kernel(x_ref, mean_ref, disp_ref, pi_ref, out_ref, *,
                 scale_factor, ridge_lambda, sub_rows):
    i = pl.program_id(1)  # inner ("arbitrary") reduction axis

    @pl.when(i == 0)
    def _():
        out_ref[...] = jnp.zeros_like(out_ref)

    tile_rows = x_ref.shape[0]
    num_sub = tile_rows // sub_rows

    def process(row0):
        rows = pl.ds(row0, sub_rows)
        # Cast per sub-block inside the kernel (16-bit callers DMA 16-bit tiles).
        x = x_ref[rows, :].astype(jnp.float32)
        mean = mean_ref[rows, :].astype(jnp.float32) * scale_factor
        disp = disp_ref[rows, :].astype(jnp.float32)
        pi = pi_ref[rows, :].astype(jnp.float32)

        # Shared logs; no divide: log(1 + mean/(disp+eps)) == log_dm - log_disp.
        log_disp = jnp.log(disp + EPS)
        log_dm = jnp.log(disp + mean + EPS)
        log1p_term = log_dm - log_disp

        # t1 = lgamma(disp+eps) + lgamma(x+1) - lgamma(x+disp+eps).
        # Lanczos only for lgamma(disp+eps); Stirling for the two large args.
        # Lanes with x <= 1e-8 (count 0) may produce garbage in nb_case but are
        # discarded by the final select.
        # TODO(synk): if fractional x in (1e-8, 1) with tiny disp must be
        # supported, fall back to the Lanczos path for lgamma(x + disp + eps).
        t1 = (_lgamma_pos(disp + EPS, log_z=log_disp)
              + _stirling_lgamma(x + 1.0)
              - _stirling_lgamma(x + disp + EPS))
        t2 = (disp + x) * log1p_term + x * (log_disp - jnp.log(mean + EPS))
        nb_case = t1 + t2 - jnp.log(1.0 - pi + EPS)

        # zero-inflation branch:
        #   ((disp+eps)/(disp+mean+eps))**disp == exp(-disp * log1p_term)
        # (reference uses disp in the numerator; difference is negligible at
        #  eps = 1e-10, including disp -> 0 where both tend to 1).
        zero_nb = jnp.exp(-disp * log1p_term)
        zero_case = -jnp.log(pi + (1.0 - pi) * zero_nb + EPS)

        result = jnp.where(x <= 1e-08, zero_case, nb_case)
        if ridge_lambda > 0:
            result = result + ridge_lambda * jnp.square(pi)

        # Fold (sub_rows, g) -> (8, g) with pure VALU adds (no XLU) and
        # accumulate into the resident per-chunk output block.
        if sub_rows == 8:
            out_ref[...] += result
        else:
            g = result.shape[-1]
            out_ref[...] += result.reshape(sub_rows // 8, 8, g).sum(axis=0)

    if num_sub == 1:
        process(0)
    else:
        # Bound the live-intermediate working set independently of the DMA tile.
        @pl.loop(0, num_sub)
        def _(s):
            process(pl.multiple_of(s * sub_rows, sub_rows))


# ---------------------------------------------------------------------------
# Wrapper
# ---------------------------------------------------------------------------
def _largest_aligned_divisor(total, cap):
    """Largest multiple of 8 that divides `total` and is <= cap (min 8)."""
    cap = max(8, min(int(cap), int(total)))
    best = 8
    for d in range(8, cap + 1, 8):
        if total % d == 0:
            best = d
    return best


def zinb_loss(x, mean, disp, pi, scale_factor=1.0, ridge_lambda=0.0, *,
              tile_rows=None, sub_rows=None, num_chunks=2):
    """Pallas TPU implementation of ZINBLoss.forward. Returns a scalar f32."""
    assert x.shape == mean.shape == disp.shape == pi.shape and x.ndim == 2
    assert num_chunks >= 1
    n, g = x.shape

    # Generation-aware VMEM budget (v7x: 64 MiB/core -> ~48 MiB; v5e/v6e: 96 MiB).
    try:
        phys_vmem = int(pltpu.get_tpu_info().vmem_capacity_bytes)
    except Exception:
        phys_vmem = 64 * 1024 * 1024          # conservative fallback (v7x per-core)
    vmem_limit = int(min(phys_vmem * 3 // 4, 96 * 1024 * 1024))

    # Zero-pad rows so the parallel axis always carries `num_chunks` chunks
    # (keeps both v7x TensorCores busy). Padded rows (all zeros) contribute
    # ~-1e-10 each; the mean divides by the ORIGINAL n*g.
    row_align = 8 * num_chunks
    n_pad = ((n + row_align - 1) // row_align) * row_align
    if n_pad != n:
        pad = ((0, n_pad - n), (0, 0))
        x, mean, disp, pi = (jnp.pad(a, pad) for a in (x, mean, disp, pi))
    rows_per_chunk = n_pad // num_chunks

    # DMA tile: sized from the 4 input double-buffers only (in the inputs' own
    # dtypes, since casting happens in-kernel).
    in_bytes_per_row = 2 * g * sum(jnp.dtype(a.dtype).itemsize
                                   for a in (x, mean, disp, pi))
    if tile_rows is None:
        tile_rows = _largest_aligned_divisor(
            rows_per_chunk, (vmem_limit // 2) // max(in_bytes_per_row, 1))
    assert tile_rows % 8 == 0 and rows_per_chunk % tile_rows == 0

    # Compute sub-block: bounds the ~16 live (sub_rows, g) f32 temporaries.
    live_temps = 16
    inter_budget = min(vmem_limit // 4, 8 * 1024 * 1024)
    if sub_rows is None:
        sub_rows = _largest_aligned_divisor(
            tile_rows, inter_budget // max(live_temps * g * 4, 1))
    assert sub_rows % 8 == 0 and tile_rows % sub_rows == 0

    inner = rows_per_chunk // tile_rows

    kernel = functools.partial(
        _zinb_kernel,
        scale_factor=float(scale_factor),
        ridge_lambda=float(ridge_lambda),
        sub_rows=sub_rows,
    )

    in_spec = pl.BlockSpec((tile_rows, g), lambda c, i: (c * inner + i, 0))
    partials = pl.pallas_call(
        kernel,
        out_shape=jax.ShapeDtypeStruct((num_chunks * 8, g), jnp.float32),
        grid_spec=pltpu.PrefetchScalarGridSpec(
            num_scalar_prefetch=0,
            grid=(num_chunks, inner),
            in_specs=[in_spec, in_spec, in_spec, in_spec],
            # One resident (8, g) accumulator block per parallel chunk.
            out_specs=pl.BlockSpec((8, g), lambda c, i: (c, 0)),
        ),
        compiler_params=pltpu.CompilerParams(
            dimension_semantics=("parallel", "arbitrary"),
            vmem_limit_bytes=vmem_limit,
        ),
    )(x, mean, disp, pi)

    # Tiny (num_chunks*8, g) cross-lane reduce + mean left to XLA.
    return jnp.sum(partials) / float(n * g)


# ---------------------------------------------------------------------------
# Pure-JAX reference mirroring the PyTorch module
# ---------------------------------------------------------------------------
def _zinb_loss_ref(x, mean, disp, pi, scale_factor=1.0, ridge_lambda=0.0):
    lgamma = jax.scipy.special.gammaln
    mean = mean * scale_factor
    t1 = lgamma(disp + EPS) + lgamma(x + 1.0) - lgamma(x + disp + EPS)
    t2 = (disp + x) * jnp.log(1.0 + mean / (disp + EPS)) + \
         x * (jnp.log(disp + EPS) - jnp.log(mean + EPS))
    nb_case = t1 + t2 - jnp.log(1.0 - pi + EPS)
    zero_nb = jnp.power(disp / (disp + mean + EPS), disp)
    zero_case = -jnp.log(pi + (1.0 - pi) * zero_nb + EPS)
    result = jnp.where(x <= 1e-08, zero_case, nb_case)
    if ridge_lambda > 0:
        result = result + ridge_lambda * jnp.square(pi)
    return jnp.mean(result)


if __name__ == "__main__":
    key = jax.random.PRNGKey(0)
    k1, k2, k3, k4 = jax.random.split(key, 4)

    N, G = 32, 256  # (cells, genes)
    # Synthetic count data / ZINB parameters (deterministic, no checkpoint load).
    x = jax.random.poisson(k1, lam=3.0, shape=(N, G)).astype(jnp.float32)
    mean = jnp.exp(jax.random.normal(k2, (N, G), jnp.float32) * 0.5 + 1.0)
    disp = jnp.exp(jax.random.normal(k3, (N, G), jnp.float32) * 0.3)
    pi = jax.nn.sigmoid(jax.random.normal(k4, (N, G), jnp.float32))

    # 1) Auto-tiled path (2 parallel chunks, one tile each).
    loss = jax.block_until_ready(zinb_loss(x, mean, disp, pi))
    ref = _zinb_loss_ref(x, mean, disp, pi)
    assert jnp.allclose(loss, ref, rtol=1e-3, atol=1e-3), (loss, ref)

    # 2) Forced small tiles + scale_factor + ridge_lambda (multi-step inner axis).
    loss2 = jax.block_until_ready(
        zinb_loss(x, mean, disp, pi, scale_factor=2.0, ridge_lambda=0.1,
                  tile_rows=8))
    ref2 = _zinb_loss_ref(x, mean, disp, pi, scale_factor=2.0, ridge_lambda=0.1)
    assert jnp.allclose(loss2, ref2, rtol=1e-3, atol=1e-3), (loss2, ref2)

    # 3) Odd row count (24 -> zero-padded to 32 so both chunks stay busy) and a
    #    forced in-kernel sub-block loop (tile_rows=16, sub_rows=8).
    Np = 24
    xs, ms, ds, ps = x[:Np], mean[:Np], disp[:Np], pi[:Np]
    loss3 = jax.block_until_ready(
        zinb_loss(xs, ms, ds, ps, tile_rows=16, sub_rows=8))
    ref3 = _zinb_loss_ref(xs, ms, ds, ps)
    assert jnp.allclose(loss3, ref3, rtol=1e-3, atol=1e-3), (loss3, ref3)

    print("KERNEL_OK")
</pallas_src>

<mosaic_0001>
module attributes {stable_mosaic.version = 11 : i64} {
  func.func @_zinb_kernel(%arg0: i32, %arg1: i32, %arg2: memref<16x256xf32, #tpu.memory_space<vmem>>, %arg3: memref<16x256xf32, #tpu.memory_space<vmem>>, %arg4: memref<16x256xf32, #tpu.memory_space<vmem>>, %arg5: memref<16x256xf32, #tpu.memory_space<vmem>>, %arg6: memref<8x256xf32, #tpu.memory_space<vmem>>) attributes {dimension_semantics = [#tpu.dimension_semantics<parallel>, #tpu.dimension_semantics<arbitrary>], iteration_bounds = array<i64: 2, 1>, scalar_prefetch = 0 : i64, scratch_operands = 0 : i64, tpu.core_type = #tpu.core_type<tc>, window_params = [{transform_indices = @transform_0, window_bounds = array<i64: 16, 256>}, {transform_indices = @transform_1, window_bounds = array<i64: 16, 256>}, {transform_indices = @transform_2, window_bounds = array<i64: 16, 256>}, {transform_indices = @transform_3, window_bounds = array<i64: 16, 256>}, {transform_indices = @transform_4, window_bounds = array<i64: 8, 256>}]} {
    %c0_i32 = arith.constant 0 : i32
    %0 = arith.cmpi eq, %arg1, %c0_i32 : i32
    %1 = arith.extui %0 : i1 to i32
    %c0_i32_0 = arith.constant 0 : i32
    %2 = arith.cmpi ne, %1, %c0_i32_0 : i32
    scf.if %2 {
      %cst_59 = arith.constant 0.000000e+00 : f32
      %167 = vector.broadcast %cst_59 : f32 to vector<8x256xf32>
      %c0_60 = arith.constant 0 : index
      %c0_61 = arith.constant 0 : index
      %168 = vector.load %arg6[%c0_60, %c0_61] : memref<8x256xf32, #tpu.memory_space<vmem>>, vector<8x256xf32>
      tpu.vector_store %arg6[%c0_60, %c0_61], %167 {strides = array<i32>} : memref<8x256xf32, #tpu.memory_space<vmem>>, vector<8x256xf32>,
    } else {
    }
    %c0 = arith.constant 0 : index
    %c0_1 = arith.constant 0 : index
    %3 = vector.load %arg2[%c0, %c0_1] : memref<16x256xf32, #tpu.memory_space<vmem>>, vector<16x256xf32>
    %c0_2 = arith.constant 0 : index
    %c0_3 = arith.constant 0 : index
    %4 = vector.load %arg3[%c0_2, %c0_3] : memref<16x256xf32, #tpu.memory_space<vmem>>, vector<16x256xf32>
    %cst = arith.constant 1.000000e+00 : f32
    %5 = vector.broadcast %cst : f32 to vector<16x256xf32>
    %6 = arith.mulf %4, %5 : vector<16x256xf32>
    %c0_4 = arith.constant 0 : index
    %c0_5 = arith.constant 0 : index
    %7 = vector.load %arg4[%c0_4, %c0_5] : memref<16x256xf32, #tpu.memory_space<vmem>>, vector<16x256xf32>
    %c0_6 = arith.constant 0 : index
    %c0_7 = arith.constant 0 : index
    %8 = vector.load %arg5[%c0_6, %c0_7] : memref<16x256xf32, #tpu.memory_space<vmem>>, vector<16x256xf32>
    %cst_8 = arith.constant 1.000000e-10 : f32
    %9 = vector.broadcast %cst_8 : f32 to vector<16x256xf32>
    %10 = arith.addf %7, %9 : vector<16x256xf32>
    %11 = math.log %10 : vector<16x256xf32>
    %12 = arith.addf %7, %6 : vector<16x256xf32>
    %cst_9 = arith.constant 1.000000e-10 : f32
    %13 = vector.broadcast %cst_9 : f32 to vector<16x256xf32>
    %14 = arith.addf %12, %13 : vector<16x256xf32>
    %15 = math.log %14 : vector<16x256xf32>
    %16 = arith.subf %15, %11 : vector<16x256xf32>
    %cst_10 = arith.constant 1.000000e-10 : f32
    %17 = vector.broadcast %cst_10 : f32 to vector<16x256xf32>
    %18 = arith.addf %7, %17 : vector<16x256xf32>
    %cst_11 = arith.constant 5.000000e-01 : f32
    %19 = vector.broadcast %cst_11 : f32 to vector<16x256xf32>
    %20 = arith.cmpf olt, %18, %19 : vector<16x256xf32>
    %cst_12 = arith.constant 1.000000e+00 : f32
    %21 = vector.broadcast %cst_12 : f32 to vector<16x256xf32>
    %22 = arith.subf %18, %21 : vector<16x256xf32>
    %23 = arith.select %20, %18, %22 : vector<16x256xi1>, vector<16x256xf32>
    %cst_13 = arith.constant 1.000000e+00 : f32
    %24 = vector.broadcast %cst_13 : f32 to vector<16x256xf32>
    %cst_14 = arith.constant 1.000000e+00 : f32
    %25 = vector.broadcast %cst_14 : f32 to vector<16x256xf32>
    %26 = arith.addf %23, %25 : vector<16x256xf32>
    %cst_15 = arith.constant 2.000000e+00 : f32
    %27 = vector.broadcast %cst_15 : f32 to vector<16x256xf32>
    %28 = arith.addf %23, %27 : vector<16x256xf32>
    %cst_16 = arith.constant 676.520386 : f32
    %29 = vector.broadcast %cst_16 : f32 to vector<16x256xf32>
    %30 = arith.mulf %29, %28 : vector<16x256xf32>
    %cst_17 = arith.constant -1259.13916 : f32
    %31 = vector.broadcast %cst_17 : f32 to vector<16x256xf32>
    %32 = arith.mulf %31, %26 : vector<16x256xf32>
    %33 = arith.addf %30, %32 : vector<16x256xf32>
    %34 = arith.mulf %26, %28 : vector<16x256xf32>
    %35 = arith.divf %33, %34 : vector<16x256xf32>
    %36 = arith.addf %24, %35 : vector<16x256xf32>
    %cst_18 = arith.constant 3.000000e+00 : f32
    %37 = vector.broadcast %cst_18 : f32 to vector<16x256xf32>
    %38 = arith.addf %23, %37 : vector<16x256xf32>
    %cst_19 = arith.constant 4.000000e+00 : f32
    %39 = vector.broadcast %cst_19 : f32 to vector<16x256xf32>
    %40 = arith.addf %23, %39 : vector<16x256xf32>
    %cst_20 = arith.constant 771.323425 : f32
    %41 = vector.broadcast %cst_20 : f32 to vector<16x256xf32>
    %42 = arith.mulf %41, %40 : vector<16x256xf32>
    %cst_21 = arith.constant -176.615036 : f32
    %43 = vector.broadcast %cst_21 : f32 to vector<16x256xf32>
    %44 = arith.mulf %43, %38 : vector<16x256xf32>
    %45 = arith.addf %42, %44 : vector<16x256xf32>
    %46 = arith.mulf %38, %40 : vector<16x256xf32>
    %47 = arith.divf %45, %46 : vector<16x256xf32>
    %48 = arith.addf %36, %47 : vector<16x256xf32>
    %cst_22 = arith.constant 5.000000e+00 : f32
    %49 = vector.broadcast %cst_22 : f32 to vector<16x256xf32>
    %50 = arith.addf %23, %49 : vector<16x256xf32>
    %cst_23 = arith.constant 6.000000e+00 : f32
    %51 = vector.broadcast %cst_23 : f32 to vector<16x256xf32>
    %52 = arith.addf %23, %51 : vector<16x256xf32>
    %cst_24 = arith.constant 12.5073433 : f32
    %53 = vector.broadcast %cst_24 : f32 to vector<16x256xf32>
    %54 = arith.mulf %53, %52 : vector<16x256xf32>
    %cst_25 = arith.constant -0.138571098 : f32
    %55 = vector.broadcast %cst_25 : f32 to vector<16x256xf32>
    %56 = arith.mulf %55, %50 : vector<16x256xf32>
    %57 = arith.addf %54, %56 : vector<16x256xf32>
    %58 = arith.mulf %50, %52 : vector<16x256xf32>
    %59 = arith.divf %57, %58 : vector<16x256xf32>
    %60 = arith.addf %48, %59 : vector<16x256xf32>
    %cst_26 = arith.constant 7.000000e+00 : f32
    %61 = vector.broadcast %cst_26 : f32 to vector<16x256xf32>
    %62 = arith.addf %23, %61 : vector<16x256xf32>
    %cst_27 = arith.constant 8.000000e+00 : f32
    %63 = vector.broadcast %cst_27 : f32 to vector<16x256xf32>
    %64 = arith.addf %23, %63 : vector<16x256xf32>
    %cst_28 = arith.constant 9.98436917E-6 : f32
    %65 = vector.broadcast %cst_28 : f32 to vector<16x256xf32>
    %66 = arith.mulf %65, %64 : vector<16x256xf32>
    %cst_29 = arith.constant 1.50563267E-7 : f32
    %67 = vector.broadcast %cst_29 : f32 to vector<16x256xf32>
    %68 = arith.mulf %67, %62 : vector<16x256xf32>
    %69 = arith.addf %66, %68 : vector<16x256xf32>
    %70 = arith.mulf %62, %64 : vector<16x256xf32>
    %71 = arith.divf %69, %70 : vector<16x256xf32>
    %72 = arith.addf %60, %71 : vector<16x256xf32>
    %cst_30 = arith.constant 7.000000e+00 : f32
    %73 = vector.broadcast %cst_30 : f32 to vector<16x256xf32>
    %74 = arith.addf %23, %73 : vector<16x256xf32>
    %cst_31 = arith.constant 5.000000e-01 : f32
    %75 = vector.broadcast %cst_31 : f32 to vector<16x256xf32>
    %76 = arith.addf %74, %75 : vector<16x256xf32>
    %cst_32 = arith.constant 5.000000e-01 : f32
    %77 = vector.broadcast %cst_32 : f32 to vector<16x256xf32>
    %78 = arith.addf %23, %77 : vector<16x256xf32>
    %79 = math.log %76 : vector<16x256xf32>
    %80 = arith.mulf %78, %79 : vector<16x256xf32>
    %cst_33 = arith.constant 0.918938517 : f32
    %81 = vector.broadcast %cst_33 : f32 to vector<16x256xf32>
    %82 = arith.addf %81, %80 : vector<16x256xf32>
    %83 = arith.subf %82, %76 : vector<16x256xf32>
    %84 = math.log %72 : vector<16x256xf32>
    %85 = arith.addf %83, %84 : vector<16x256xf32>
    %86 = arith.subf %85, %11 : vector<16x256xf32>
    %87 = arith.select %20, %86, %85 : vector<16x256xi1>, vector<16x256xf32>
    %cst_34 = arith.constant 1.000000e+00 : f32
    %88 = vector.broadcast %cst_34 : f32 to vector<16x256xf32>
    %89 = arith.addf %3, %88 : vector<16x256xf32>
    %90 = tpu.reciprocal %89 {approx = true} : vector<16x256xf32> -> vector<16x256xf32>
    %91 = arith.mulf %90, %90 : vector<16x256xf32>
    %cst_35 = arith.constant 7.93650805E-4 : f32
    %92 = vector.broadcast %cst_35 : f32 to vector<16x256xf32>
    %93 = arith.mulf %91, %92 : vector<16x256xf32>
    %cst_36 = arith.constant -0.00277777785 : f32
    %94 = vector.broadcast %cst_36 : f32 to vector<16x256xf32>
    %95 = arith.addf %94, %93 : vector<16x256xf32>
    %96 = arith.mulf %91, %95 : vector<16x256xf32>
    %cst_37 = arith.constant 0.0833333358 : f32
    %97 = vector.broadcast %cst_37 : f32 to vector<16x256xf32>
    %98 = arith.addf %97, %96 : vector<16x256xf32>
    %99 = arith.mulf %90, %98 : vector<16x256xf32>
    %cst_38 = arith.constant 5.000000e-01 : f32
    %100 = vector.broadcast %cst_38 : f32 to vector<16x256xf32>
    %101 = arith.subf %89, %100 : vector<16x256xf32>
    %102 = math.log %89 : vector<16x256xf32>
    %103 = arith.mulf %101, %102 : vector<16x256xf32>
    %104 = arith.subf %103, %89 : vector<16x256xf32>
    %cst_39 = arith.constant 0.918938517 : f32
    %105 = vector.broadcast %cst_39 : f32 to vector<16x256xf32>
    %106 = arith.addf %104, %105 : vector<16x256xf32>
    %107 = arith.addf %106, %99 : vector<16x256xf32>
    %108 = arith.addf %87, %107 : vector<16x256xf32>
    %109 = arith.addf %3, %7 : vector<16x256xf32>
    %cst_40 = arith.constant 1.000000e-10 : f32
    %110 = vector.broadcast %cst_40 : f32 to vector<16x256xf32>
    %111 = arith.addf %109, %110 : vector<16x256xf32>
    %112 = tpu.reciprocal %111 {approx = true} : vector<16x256xf32> -> vector<16x256xf32>
    %113 = arith.mulf %112, %112 : vector<16x256xf32>
    %cst_41 = arith.constant 7.93650805E-4 : f32
    %114 = vector.broadcast %cst_41 : f32 to vector<16x256xf32>
    %115 = arith.mulf %113, %114 : vector<16x256xf32>
    %cst_42 = arith.constant -0.00277777785 : f32
    %116 = vector.broadcast %cst_42 : f32 to vector<16x256xf32>
    %117 = arith.addf %116, %115 : vector<16x256xf32>
    %118 = arith.mulf %113, %117 : vector<16x256xf32>
    %cst_43 = arith.constant 0.0833333358 : f32
    %119 = vector.broadcast %cst_43 : f32 to vector<16x256xf32>
    %120 = arith.addf %119, %118 : vector<16x256xf32>
    %121 = arith.mulf %112, %120 : vector<16x256xf32>
    %cst_44 = arith.constant 5.000000e-01 : f32
    %122 = vector.broadcast %cst_44 : f32 to vector<16x256xf32>
    %123 = arith.subf %111, %122 : vector<16x256xf32>
    %124 = math.log %111 : vector<16x256xf32>
    %125 = arith.mulf %123, %124 : vector<16x256xf32>
    %126 = arith.subf %125, %111 : vector<16x256xf32>
    %cst_45 = arith.constant 0.918938517 : f32
    %127 = vector.broadcast %cst_45 : f32 to vector<16x256xf32>
    %128 = arith.addf %126, %127 : vector<16x256xf32>
    %129 = arith.addf %128, %121 : vector<16x256xf32>
    %130 = arith.subf %108, %129 : vector<16x256xf32>
    %131 = arith.addf %7, %3 : vector<16x256xf32>
    %132 = arith.mulf %131, %16 : vector<16x256xf32>
    %cst_46 = arith.constant 1.000000e-10 : f32
    %133 = vector.broadcast %cst_46 : f32 to vector<16x256xf32>
    %134 = arith.addf %6, %133 : vector<16x256xf32>
    %135 = math.log %134 : vector<16x256xf32>
    %136 = arith.subf %11, %135 : vector<16x256xf32>
    %137 = arith.mulf %3, %136 : vector<16x256xf32>
    %138 = arith.addf %132, %137 : vector<16x256xf32>
    %139 = arith.addf %130, %138 : vector<16x256xf32>
    %cst_47 = arith.constant 1.000000e+00 : f32
    %140 = vector.broadcast %cst_47 : f32 to vector<16x256xf32>
    %141 = arith.subf %140, %8 : vector<16x256xf32>
    %cst_48 = arith.constant 1.000000e-10 : f32
    %142 = vector.broadcast %cst_48 : f32 to vector<16x256xf32>
    %143 = arith.addf %141, %142 : vector<16x256xf32>
    %144 = math.log %143 : vector<16x256xf32>
    %145 = arith.subf %139, %144 : vector<16x256xf32>
    %cst_49 = arith.constant 0.000000e+00 : f32
    %146 = vector.broadcast %cst_49 : f32 to vector<16x256xf32>
    %147 = arith.subf %146, %7 : vector<16x256xf32>
    %148 = arith.mulf %147, %16 : vector<16x256xf32>
    %149 = math.exp %148 : vector<16x256xf32>
    %cst_50 = arith.constant 1.000000e+00 : f32
    %150 = vector.broadcast %cst_50 : f32 to vector<16x256xf32>
    %151 = arith.subf %150, %8 : vector<16x256xf32>
    %152 = arith.mulf %151, %149 : vector<16x256xf32>
    %153 = arith.addf %8, %152 : vector<16x256xf32>
    %cst_51 = arith.constant 1.000000e-10 : f32
    %154 = vector.broadcast %cst_51 : f32 to vector<16x256xf32>
    %155 = arith.addf %153, %154 : vector<16x256xf32>
    %156 = math.log %155 : vector<16x256xf32>
    %cst_52 = arith.constant 0.000000e+00 : f32
    %157 = vector.broadcast %cst_52 : f32 to vector<16x256xf32>
    %158 = arith.subf %157, %156 : vector<16x256xf32>
    %cst_53 = arith.constant 9.99999993E-9 : f32
    %159 = vector.broadcast %cst_53 : f32 to vector<16x256xf32>
    %160 = arith.cmpf ole, %3, %159 : vector<16x256xf32>
    %161 = arith.select %160, %158, %145 : vector<16x256xi1>, vector<16x256xf32>
    %c0_54 = arith.constant 0 : index
    %c0_55 = arith.constant 0 : index
    %162 = vector.load %arg6[%c0_54, %c0_55] : memref<8x256xf32, #tpu.memory_space<vmem>>, vector<8x256xf32>
    %163 = vector.shape_cast %161 : vector<16x256xf32> to vector<2x8x256xf32>
    %cst_56 = arith.constant dense<0.000000e+00> : vector<8x256xf32>
    %164 = vector.multi_reduction <add>, %163, %cst_56 [0] : vector<2x8x256xf32> to vector<8x256xf32>
    %165 = arith.addf %162, %164 : vector<8x256xf32>
    %c0_57 = arith.constant 0 : index
    %c0_58 = arith.constant 0 : index
    %166 = vector.load %arg6[%c0_57, %c0_58] : memref<8x256xf32, #tpu.memory_space<vmem>>, vector<8x256xf32>
    tpu.vector_store %arg6[%c0_57, %c0_58], %165 {strides = array<i32>} : memref<8x256xf32, #tpu.memory_space<vmem>>, vector<8x256xf32>,
    return
  }
  func.func @transform_0(%arg0: i32, %arg1: i32) -> (i32, i32) {
    %c1_i32 = arith.constant 1 : i32
    %0 = arith.muli %arg0, %c1_i32 : i32
    %1 = arith.addi %0, %arg1 : i32
    %c0_i32 = arith.constant 0 : i32
    %c0_i32_0 = arith.constant 0 : i32
    return %1, %c0_i32 : i32, i32
  }
  func.func @transform_1(%arg0: i32, %arg1: i32) -> (i32, i32) {
    %c1_i32 = arith.constant 1 : i32
    %0 = arith.muli %arg0, %c1_i32 : i32
    %1 = arith.addi %0, %arg1 : i32
    %c0_i32 = arith.constant 0 : i32
    %c0_i32_0 = arith.constant 0 : i32
    return %1, %c0_i32 : i32, i32
  }
  func.func @transform_2(%arg0: i32, %arg1: i32) -> (i32, i32) {
    %c1_i32 = arith.constant 1 : i32
    %0 = arith.muli %arg0, %c1_i32 : i32
    %1 = arith.addi %0, %arg1 : i32
    %c0_i32 = arith.constant 0 : i32
    %c0_i32_0 = arith.constant 0 : i32
    return %1, %c0_i32 : i32, i32
  }
  func.func @transform_3(%arg0: i32, %arg1: i32) -> (i32, i32) {
    %c1_i32 = arith.constant 1 : i32
    %0 = arith.muli %arg0, %c1_i32 : i32
    %1 = arith.addi %0, %arg1 : i32
    %c0_i32 = arith.constant 0 : i32
    %c0_i32_0 = arith.constant 0 : i32
    return %1, %c0_i32 : i32, i32
  }
  func.func @transform_4(%arg0: i32, %arg1: i32) -> (i32, i32) {
    %c0_i32 = arith.constant 0 : i32
    %c0_i32_0 = arith.constant 0 : i32
    return %arg0, %c0_i32 : i32, i32
  }
}

</mosaic_0001>

<llo_original>
// kernel: tpu_custom_call.1
$region0: #{tpu_custom_call.1}
  #allocation0 [shape = 'u32[]', space=smem, size = 0x4, offset = 0x4, fixed_abs, tag = 'smem constant byte address 0x4 - core index']
  #allocation1 [shape = 'u32[72,128]{1,0:T(1,128)}', space=vmem, size = 0x9000, scoped, tag = 'internal scratch']
  %s0 = inlined_call_operand.hbm [shape: f32[32,256], index: 0, kind: input, shape index: {}]
  %s1 = inlined_call_operand.hbm [shape: f32[32,256], index: 1, kind: input, shape index: {}]
  %s2 = inlined_call_operand.hbm [shape: f32[32,256], index: 2, kind: input, shape index: {}]
  %s3 = inlined_call_operand.hbm [shape: f32[32,256], index: 3, kind: input, shape index: {}]
  %s4 = inlined_call_operand.hbm [shape: f32[16,256], index: 4, kind: output, shape index: {}]
  %s5 = sld [smem:[#allocation0]]
  $region69: #{tpu_custom_call.1} parent=0
    _
  %s7 = ssub.s32 1, %s5
  %s8 = scalar_select 0, %s7, %s5
  $region1: #{tpu_custom_call.1} parent=0
    #allocation2 [shape = 'u8[32768]{0}', space=vmem, size = 0x8000, scoped, tag = 'input window, operand 0']
    #allocation3 [shape = 's32[2]{0}', space=sflag, size = 0x8, scoped, tag = 'scoped memory for tpu_custom_call.1']
    #allocation4 [shape = 's32[2]{0}', space=sflag, size = 0x8, scoped, tag = 'scoped memory for tpu_custom_call.1']
    #allocation5 [shape = 'u8[32768]{0}', space=vmem, size = 0x8000, scoped, tag = 'input window, operand 1']
    #allocation6 [shape = 's32[2]{0}', space=sflag, size = 0x8, scoped, tag = 'scoped memory for tpu_custom_call.1']
    #allocation7 [shape = 'u8[32768]{0}', space=vmem, size = 0x8000, scoped, tag = 'input window, operand 2']
    #allocation8 [shape = 'u8[32768]{0}', space=vmem, size = 0x8000, scoped, tag = 'input window, operand 3']
    #allocation9 [shape = 's32[2]{0}', space=sflag, size = 0x8, scoped, tag = 'scoped memory for tpu_custom_call.1']
    #allocation10 [shape = 'u8[16384]{0}', space=vmem, size = 0x4000, scoped, tag = 'output window, operand 0']
    %9 = vsyncpa [#allocation3], 0
    %s10 = scalar_lea.sflag [#allocation3], 1
    %11 = vsyncpa %s10, 0
    %12 = vsyncpa [#allocation6], 0
    %s13 = scalar_lea.sflag [#allocation6], 1
    %14 = vsyncpa %s13, 0
    %15 = vsyncpa [#allocation9], 0
    %s16 = scalar_lea.sflag [#allocation9], 1
    %17 = vsyncpa %s16, 0
    %18 = vsyncpa [#allocation4], 0
    %s19 = scalar_lea.sflag [#allocation4], 1
    %20 = vsyncpa %s19, 0
    loop: start=0, step=1, limit=4
    $region2: #{tpu_custom_call.1} parent=1 // loop_pre_header
      _
    $region3: #{tpu_custom_call.1} parent=1 // loop_header
      %s22 = sphi 0, %s26
      %p23 = scmp.ge.s32.totalorder %s22, 4
      %s29 = sphi 0, %s41
      %s30 = sphi 0, %s37
      %s31 = sphi 0, %s29
      %s32 = sphi 0, %s30
      %s33 = sphi 0, %s31
      %s34 = sphi 0, %s32
      %s46 = sphi 0, %s48
      %s49 = sphi 0, %s46
      %s50 = sphi 0, %s49
      %s66 = sphi 0, %s50
      %s74 = sphi 0, %s76
      %s77 = sphi 0, %s74
      %s78 = sphi 0, %s77
      %s94 = sphi 0, %s78
      %s102 = sphi 0, %s104
      %s105 = sphi 0, %s102
      %s106 = sphi 0, %s105
      %s122 = sphi 0, %s106
      %s130 = sphi 0, %s132
      %s133 = sphi 0, %s130
      %s134 = sphi 0, %s133
      %s150 = sphi 0, %s134
      %s156 = sphi 0, %s158
      %s159 = sphi 0, %s156
      %s160 = sphi 0, %s159
      %s176 = sphi 0, %s160
    $region4: #{tpu_custom_call.1} parent=1 // loop_header_branch
      %25 = sbr.rel (%p23) target = $region8
    $region5: #{tpu_custom_call.1} parent=1 // loop_body
      %s27 = ssub.s32 %s22, 1
      %s28 = ssub.s32 %s22, 2
      %s35 = sadd.s32 1, %s30
      %p36 = scmp.ge.s32.totalorder %s35, 1
      %s37 = scalar_select %p36, 0, %s35
      %s38 = sadd.s32 1, %s29
      %s39 = scalar_select %p36, %s38, %s29
      %p40 = scmp.ge.s32.totalorder %s39, 2
      %s41 = scalar_select %p40, 0, %s39
      %s42 = sadd.s32 %s29, %s30
      %s43 = sadd.s32 %s41, %s37
      %s44 = ssub.s32 %s42, %s43
      %p45 = scmp.eq.s32.totalorder %s44, 0
      %s47 = sadd.s32 %s46, 1
      %s48 = scalar_select %p45, %s46, %s47
      %p51 = pneg %p45
      %p52 = scmp.eq.s32.totalorder %s22, 1
      %p53 = por %p51, %p52
      %p54 = scmp.ne.s32.totalorder %s46, %s49
      %p55 = scmp.eq.s32.totalorder %s22, 0
      %p56 = por %p54, %p55
      %p57 = scmp.ne.s32.totalorder %s46, %s49
      %p58 = scmp.eq.s32.totalorder %s27, 1
      %p59 = por %p57, %p58
      %p60 = scmp.ne.s32.totalorder %s49, %s50
      %p61 = scmp.eq.s32.totalorder %s27, 0
      %p62 = por %p60, %p61
      %p63 = scmp.ne.s32.totalorder %s49, %s50
      %p64 = scmp.eq.s32.totalorder %s28, 1
      %p65 = por %p63, %p64
      %p67 = scmp.ne.s32.totalorder %s50, %s66
      %p68 = scmp.eq.s32.totalorder %s28, 0
      %p69 = por %p67, %p68
      %s70 = sadd.s32 %s29, %s30
      %s71 = sadd.s32 %s41, %s37
      %s72 = ssub.s32 %s70, %s71
      %p73 = scmp.eq.s32.totalorder %s72, 0
      %s75 = sadd.s32 %s74, 1
      %s76 = scalar_select %p73, %s74, %s75
      %p79 = pneg %p73
      %p80 = scmp.eq.s32.totalorder %s22, 1
      %p81 = por %p79, %p80
      %p82 = scmp.ne.s32.totalorder %s74, %s77
      %p83 = scmp.eq.s32.totalorder %s22, 0
      %p84 = por %p82, %p83
      %p85 = scmp.ne.s32.totalorder %s74, %s77
      %p86 = scmp.eq.s32.totalorder %s27, 1
      %p87 = por %p85, %p86
      %p88 = scmp.ne.s32.totalorder %s77, %s78
      %p89 = scmp.eq.s32.totalorder %s27, 0
      %p90 = por %p88, %p89
      %p91 = scmp.ne.s32.totalorder %s77, %s78
      %p92 = scmp.eq.s32.totalorder %s28, 1
      %p93 = por %p91, %p92
      %p95 = scmp.ne.s32.totalorder %s78, %s94
      %p96 = scmp.eq.s32.totalorder %s28, 0
      %p97 = por %p95, %p96
      %s98 = sadd.s32 %s29, %s30
      %s99 = sadd.s32 %s41, %s37
      %s100 = ssub.s32 %s98, %s99
      %p101 = scmp.eq.s32.totalorder %s100, 0
      %s103 = sadd.s32 %s102, 1
      %s104 = scalar_select %p101, %s102, %s103
      %p107 = pneg %p101
      %p108 = scmp.eq.s32.totalorder %s22, 1
      %p109 = por %p107, %p108
      %p110 = scmp.ne.s32.totalorder %s102, %s105
      %p111 = scmp.eq.s32.totalorder %s22, 0
      %p112 = por %p110, %p111
      %p113 = scmp.ne.s32.totalorder %s102, %s105
      %p114 = scmp.eq.s32.totalorder %s27, 1
      %p115 = por %p113, %p114
      %p116 = scmp.ne.s32.totalorder %s105, %s106
      %p117 = scmp.eq.s32.totalorder %s27, 0
      %p118 = por %p116, %p117
      %p119 = scmp.ne.s32.totalorder %s105, %s106
      %p120 = scmp.eq.s32.totalorder %s28, 1
      %p121 = por %p119, %p120
      %p123 = scmp.ne.s32.totalorder %s106, %s122
      %p124 = scmp.eq.s32.totalorder %s28, 0
      %p125 = por %p123, %p124
      %s126 = sadd.s32 %s29, %s30
      %s127 = sadd.s32 %s41, %s37
      %s128 = ssub.s32 %s126, %s127
      %p129 = scmp.eq.s32.totalorder %s128, 0
      %s131 = sadd.s32 %s130, 1
      %s132 = scalar_select %p129, %s130, %s131
      %p135 = pneg %p129
      %p136 = scmp.eq.s32.totalorder %s22, 1
      %p137 = por %p135, %p136
      %p138 = scmp.ne.s32.totalorder %s130, %s133
      %p139 = scmp.eq.s32.totalorder %s22, 0
      %p140 = por %p138, %p139
      %p141 = scmp.ne.s32.totalorder %s130, %s133
      %p142 = scmp.eq.s32.totalorder %s27, 1
      %p143 = por %p141, %p142
      %p144 = scmp.ne.s32.totalorder %s133, %s134
      %p145 = scmp.eq.s32.totalorder %s27, 0
      %p146 = por %p144, %p145
      %p147 = scmp.ne.s32.totalorder %s133, %s134
      %p148 = scmp.eq.s32.totalorder %s28, 1
      %p149 = por %p147, %p148
      %p151 = scmp.ne.s32.totalorder %s134, %s150
      %p152 = scmp.eq.s32.totalorder %s28, 0
      %p153 = por %p151, %p152
      %s154 = ssub.s32 %s29, %s41
      %p155 = scmp.eq.s32.totalorder %s154, 0
      %s157 = sadd.s32 %s156, 1
      %s158 = scalar_select %p155, %s156, %s157
      %p161 = pneg %p155
      %p162 = scmp.eq.s32.totalorder %s22, 1
      %p163 = por %p161, %p162
      %p164 = scmp.ne.s32.totalorder %s156, %s159
      %p165 = scmp.eq.s32.totalorder %s22, 0
      %p166 = por %p164, %p165
      %p167 = scmp.ne.s32.totalorder %s156, %s159
      %p168 = scmp.eq.s32.totalorder %s27, 1
      %p169 = por %p167, %p168
      %p170 = scmp.ne.s32.totalorder %s159, %s160
      %p171 = scmp.eq.s32.totalorder %s27, 0
      %p172 = por %p170, %p171
      %p173 = scmp.ne.s32.totalorder %s159, %s160
      %p174 = scmp.eq.s32.totalorder %s28, 1
      %p175 = por %p173, %p174
      %p177 = scmp.ne.s32.totalorder %s160, %s176
      %p178 = scmp.eq.s32.totalorder %s28, 0
      %p179 = por %p177, %p178
      %p180 = scmp.le.s32.totalorder 1, %s22
      %p181 = scmp.lt.s32.totalorder %s22, 3
      %p182 = pnand %p180, %p181
      %p183 = pneg %p182
      // Predicated region
      $region9: #{tpu_custom_call.1} parent=5 // pred_check
        _
      $region10: #{tpu_custom_call.1} parent=5 // pred_check_branch
        %185 = sbr.rel (%p182) target = $region12
      $region11: #{tpu_custom_call.1} parent=5 // pred_region
        %s186 = ssub.s32 %s22, 1
      $region12: #{tpu_custom_call.1} parent=5 // pred_fallthru
        _
      %p187 = scmp.lt.s32.totalorder %s22, 2
      // Predicated region
      $region13: #{tpu_custom_call.1} parent=5 // pred_check
        %p188 = pneg %p187
      $region14: #{tpu_custom_call.1} parent=5 // pred_check_branch
        %190 = sbr.rel (%p188) target = $region16
      $region15: #{tpu_custom_call.1} parent=5 // pred_region
        // Predicated region
        $region17: #{tpu_custom_call.1} parent=15 // pred_check
          %p191 = pneg %p56
        $region18: #{tpu_custom_call.1} parent=15 // pred_check_branch
          %193 = sbr.rel (%p191) target = $region20
        $region19: #{tpu_custom_call.1} parent=15 // pred_region
          %s194 = sand.u32 %s46, 1
          %s195 = scalar_lea.sflag [#allocation3], %s194
          %s196 = sand.u32 %s46, 1
          %s197 = smul.addr %s196, 32
          %s198 = scalar_lea.vmem [#allocation2], %s197
          %s199 = sadd.s32 %s29, %s30
          %s200 = smul.u32 2, %s199
          %202 = vsyncadd %s195, 0
          %s203 = smul.addr %s200, 2
          %s204 = smul.addr %s203, 8
          %s205 = scalar_lea.hbm %s0, %s204
          %s206 = sshll.u32 %s205, 4
          %s207 = int_to_ptr.hbm [resolvable:$true] %s206
          %s208 = sshll.u32 %s198, 4
          %s209 = int_to_ptr.vmem [resolvable:$true] %s208
          %214 = dma.hbm_to_vmem [thread:$0]  %s207, 512, %s209, %s195, 256, 256, 16
        $region20: #{tpu_custom_call.1} parent=15 // pred_fallthru
          _
        // Predicated region
        $region21: #{tpu_custom_call.1} parent=15 // pred_check
          %p215 = pneg %p84
        $region22: #{tpu_custom_call.1} parent=15 // pred_check_branch
          %217 = sbr.rel (%p215) target = $region24
        $region23: #{tpu_custom_call.1} parent=15 // pred_region
          %s218 = sand.u32 %s22, 1
          %s219 = scalar_lea.sflag [#allocation6], %s218
          %s220 = sand.u32 %s74, 1
          %s221 = smul.addr %s220, 32
          %s222 = scalar_lea.vmem [#allocation5], %s221
          %s223 = sadd.s32 %s29, %s30
          %s224 = smul.u32 2, %s223
          %226 = vsyncadd %s219, 0
          %s227 = smul.addr %s224, 2
          %s228 = smul.addr %s227, 8
          %s229 = scalar_lea.hbm %s1, %s228
          %s230 = sshll.u32 %s229, 4
          %s231 = int_to_ptr.hbm [resolvable:$true] %s230
          %s232 = sshll.u32 %s222, 4
          %s233 = int_to_ptr.vmem [resolvable:$true] %s232
          %238 = dma.hbm_to_vmem [thread:$0]  %s231, 512, %s233, %s219, 256, 256, 16
        $region24: #{tpu_custom_call.1} parent=15 // pred_fallthru
          _
        // Predicated region
        $region25: #{tpu_custom_call.1} parent=15 // pred_check
          %p239 = pneg %p112
        $region26: #{tpu_custom_call.1} parent=15 // pred_check_branch
          %241 = sbr.rel (%p239) target = $region28
        $region27: #{tpu_custom_call.1} parent=15 // pred_region
          %s242 = sand.u32 %s22, 1
          %s243 = scalar_lea.sflag [#allocation6], %s242
          %s244 = sand.u32 %s102, 1
          %s245 = smul.addr %s244, 32
          %s246 = scalar_lea.vmem [#allocation7], %s245
          %s247 = sadd.s32 %s29, %s30
          %s248 = smul.u32 2, %s247
          %250 = vsyncadd %s243, 0
          %s251 = smul.addr %s248, 2
          %s252 = smul.addr %s251, 8
          %s253 = scalar_lea.hbm %s2, %s252
          %s254 = sshll.u32 %s253, 4
          %s255 = int_to_ptr.hbm [resolvable:$true] %s254
          %s256 = sshll.u32 %s246, 4
          %s257 = int_to_ptr.vmem [resolvable:$true] %s256
          %262 = dma.hbm_to_vmem [thread:$0]  %s255, 512, %s257, %s243, 256, 256, 16
        $region28: #{tpu_custom_call.1} parent=15 // pred_fallthru
          _
        // Predicated region
        $region29: #{tpu_custom_call.1} parent=15 // pred_check
          %p263 = pneg %p140
        $region30: #{tpu_custom_call.1} parent=15 // pred_check_branch
          %265 = sbr.rel (%p263) target = $region32
        $region31: #{tpu_custom_call.1} parent=15 // pred_region
          %s266 = sand.u32 %s130, 1
          %s267 = scalar_lea.sflag [#allocation9], %s266
          %s268 = sand.u32 %s130, 1
          %s269 = smul.addr %s268, 32
          %s270 = scalar_lea.vmem [#allocation8], %s269
          %s271 = sadd.s32 %s29, %s30
          %s272 = smul.u32 2, %s271
          %274 = vsyncadd %s267, 0
          %s275 = smul.addr %s272, 2
          %s276 = smul.addr %s275, 8
          %s277 = scalar_lea.hbm %s3, %s276
          %s278 = sshll.u32 %s277, 4
          %s279 = int_to_ptr.hbm [resolvable:$true] %s278
          %s280 = sshll.u32 %s270, 4
          %s281 = int_to_ptr.vmem [resolvable:$true] %s280
          %286 = dma.hbm_to_vmem [thread:$0]  %s279, 512, %s281, %s267, 256, 256, 16
        $region32: #{tpu_custom_call.1} parent=15 // pred_fallthru
          _
      $region16: #{tpu_custom_call.1} parent=5 // pred_fallthru
        _
      %p287 = scmp.le.s32.totalorder 1, %s22
      %p288 = scmp.lt.s32.totalorder %s22, 3
      %p289 = pnand %p287, %p288
      %p290 = pneg %p289
      // Predicated region
      $region33: #{tpu_custom_call.1} parent=5 // pred_check
        _
      $region34: #{tpu_custom_call.1} parent=5 // pred_check_branch
        %292 = sbr.rel (%p289) target = $region36
      $region35: #{tpu_custom_call.1} parent=5 // pred_region
        %s293 = ssub.s32 %s22, 1
        %s294 = sand.u32 %s49, 1
        %s295 = scalar_lea.sflag [#allocation3], %s294
        %s296 = sand.u32 %s49, 1
        %s297 = smul.addr %s296, 32
        %s298 = scalar_lea.vmem [#allocation2], %s297
        // Predicated region
        $region37: #{tpu_custom_call.1} parent=35 // pred_check
          %p299 = pneg %p62
        $region38: #{tpu_custom_call.1} parent=35 // pred_check_branch
          %301 = sbr.rel (%p299) target = $region40
        $region39: #{tpu_custom_call.1} parent=35 // pred_region
          %303 = dma.done %s295, 512
        $region40: #{tpu_custom_call.1} parent=35 // pred_fallthru
          _
        %s304 = sand.u32 %s27, 1
        %s305 = scalar_lea.sflag [#allocation6], %s304
        %s306 = sand.u32 %s77, 1
        %s307 = smul.addr %s306, 32
        %s308 = scalar_lea.vmem [#allocation5], %s307
        // Predicated region
        $region41: #{tpu_custom_call.1} parent=35 // pred_check
          %p309 = pneg %p90
        $region42: #{tpu_custom_call.1} parent=35 // pred_check_branch
          %311 = sbr.rel (%p309) target = $region44
        $region43: #{tpu_custom_call.1} parent=35 // pred_region
          %313 = dma.done %s305, 512
        $region44: #{tpu_custom_call.1} parent=35 // pred_fallthru
          _
        %s314 = sand.u32 %s27, 1
        %s315 = scalar_lea.sflag [#allocation6], %s314
        %s316 = sand.u32 %s105, 1
        %s317 = smul.addr %s316, 32
        %s318 = scalar_lea.vmem [#allocation7], %s317
        // Predicated region
        $region45: #{tpu_custom_call.1} parent=35 // pred_check
          %p319 = pneg %p118
        $region46: #{tpu_custom_call.1} parent=35 // pred_check_branch
          %321 = sbr.rel (%p319) target = $region48
        $region47: #{tpu_custom_call.1} parent=35 // pred_region
          %323 = dma.done %s315, 512
        $region48: #{tpu_custom_call.1} parent=35 // pred_fallthru
          _
        %s324 = sand.u32 %s133, 1
        %s325 = scalar_lea.sflag [#allocation9], %s324
        %s326 = sand.u32 %s133, 1
        %s327 = smul.addr %s326, 32
        %s328 = scalar_lea.vmem [#allocation8], %s327
        // Predicated region
        $region49: #{tpu_custom_call.1} parent=35 // pred_check
          %p329 = pneg %p146
        $region50: #{tpu_custom_call.1} parent=35 // pred_check_branch
          %331 = sbr.rel (%p329) target = $region52
        $region51: #{tpu_custom_call.1} parent=35 // pred_region
          %333 = dma.done %s325, 512
        $region52: #{tpu_custom_call.1} parent=35 // pred_fallthru
          _
        %s334 = sand.u32 %s49, 1
        %s335 = scalar_lea.sflag [#allocation3], %s334
        %s336 = sand.u32 %s49, 1
        %s337 = smul.addr %s336, 32
        %s338 = scalar_lea.vmem [#allocation2], %s337
        %p339 = pneg %p62
        %p340 = pneg %p59
        %s341 = sand.u32 %s27, 1
        %s342 = scalar_lea.sflag [#allocation6], %s341
        %s343 = sand.u32 %s77, 1
        %s344 = smul.addr %s343, 32
        %s345 = scalar_lea.vmem [#allocation5], %s344
        %p346 = pneg %p90
        %p347 = pneg %p87
        %s348 = sand.u32 %s27, 1
        %s349 = scalar_lea.sflag [#allocation6], %s348
        %s350 = sand.u32 %s105, 1
        %s351 = smul.addr %s350, 32
        %s352 = scalar_lea.vmem [#allocation7], %s351
        %p353 = pneg %p118
        %p354 = pneg %p115
        %s355 = sand.u32 %s133, 1
        %s356 = scalar_lea.sflag [#allocation9], %s355
        %s357 = sand.u32 %s133, 1
        %s358 = smul.addr %s357, 32
        %s359 = scalar_lea.vmem [#allocation8], %s358
        %p360 = pneg %p146
        %p361 = pneg %p143
        %p362 = pneg %p172
        %p363 = pneg %p169
        %s364 = sand.u32 %s159, 1
        %s365 = scalar_lea.sflag [#allocation4], %s364
        %s366 = sand.u32 %s159, 1
        %s367 = smul.addr %s366, 16
        %s368 = scalar_lea.vmem [#allocation10], %s367
        %s369 = sadd.s32 %s31, %s32
        %s370 = smul.u32 2, %s369
        %s371 = sadd.s32 %s31, %s32
        %s372 = smul.u32 2, %s371
        %s373 = sadd.s32 %s31, %s32
        %s374 = smul.u32 2, %s373
        %s375 = sadd.s32 %s31, %s32
        %s376 = smul.u32 2, %s375
        %p377 = scmp.eq.s32.totalorder %s32, 0
        // Predicated region
        $region53: #{tpu_custom_call.1} parent=35 // pred_check
          %p378 = pneg %p377
        $region54: #{tpu_custom_call.1} parent=35 // pred_check_branch
          %380 = sbr.rel (%p378) target = $region56
        $region55: #{tpu_custom_call.1} parent=35 // pred_region
          %381 = vst [vmem:[%s368] sm:$0xff] 0.0
          %382 = vst [vmem:[%s368 + $0x8] sm:$0xff] 0.0
        $region56: #{tpu_custom_call.1} parent=35 // pred_fallthru
          _
        %v383 = vld [vmem:[%s298] sm:$0xff]
        %v384 = vld [vmem:[%s298 + $0x8] sm:$0xff]
        %v385 = vld [vmem:[%s298 + $0x10] sm:$0xff]
        %v386 = vld [vmem:[%s298 + $0x18] sm:$0xff]
        %v387 = vld [vmem:[%s308] sm:$0xff]
        %v388 = vld [vmem:[%s308 + $0x8] sm:$0xff]
        %v389 = vld [vmem:[%s308 + $0x10] sm:$0xff]
        %v390 = vld [vmem:[%s308 + $0x18] sm:$0xff]
        %v391 = vld [vmem:[%s318] sm:$0xff]
        %v392 = vld [vmem:[%s318 + $0x8] sm:$0xff]
        %v393 = vld [vmem:[%s318 + $0x10] sm:$0xff]
        %v394 = vld [vmem:[%s318 + $0x18] sm:$0xff]
        %v395 = vld [vmem:[%s328] sm:$0xff]
        %v396 = vld [vmem:[%s328 + $0x8] sm:$0xff]
        %v397 = vld [vmem:[%s328 + $0x10] sm:$0xff]
        %v398 = vld [vmem:[%s328 + $0x18] sm:$0xff]
        %v399 = vadd.f32 %v391, 1e-10
        %v400 = vadd.f32 %v392, 1e-10
        %v401 = vadd.f32 %v393, 1e-10
        %v402 = vadd.f32 %v394, 1e-10
        %v403 = vlog2.pop %v399
        %v404 = vmul.f32 %v403, 0.6931472
        %v405 = vlog2.pop %v400
        %v406 = vmul.f32 %v405, 0.6931472
        %v407 = vlog2.pop %v401
        %v408 = vmul.f32 %v407, 0.6931472
        %v409 = vlog2.pop %v402
        %v410 = vmul.f32 %v409, 0.6931472
        %v411 = vadd.f32 %v391, %v387
        %v412 = vadd.f32 %v392, %v388
        %v413 = vadd.f32 %v393, %v389
        %v414 = vadd.f32 %v394, %v390
        %v415 = vadd.f32 %v411, 1e-10
        %v416 = vadd.f32 %v412, 1e-10
        %v417 = vadd.f32 %v413, 1e-10
        %v418 = vadd.f32 %v414, 1e-10
        %v419 = vlog2.pop %v415
        %v420 = vmul.f32 %v419, 0.6931472
        %v421 = vlog2.pop %v416
        %v422 = vmul.f32 %v421, 0.6931472
        %v423 = vlog2.pop %v417
        %v424 = vmul.f32 %v423, 0.6931472
        %v425 = vlog2.pop %v418
        %v426 = vmul.f32 %v425, 0.6931472
        %v427 = vsub.f32 %v420, %v404
        %v428 = vsub.f32 %v422, %v406
        %v429 = vsub.f32 %v424, %v408
        %v430 = vsub.f32 %v426, %v410
        %vm431 = vcmp.lt.f32.partialorder %v399, 0.5
        %vm432 = vcmp.lt.f32.partialorder %v400, 0.5
        %vm433 = vcmp.lt.f32.partialorder %v401, 0.5
        %vm434 = vcmp.lt.f32.partialorder %v402, 0.5
        %v435 = vsub.f32 %v399, 1.0
        %v436 = vsub.f32 %v400, 1.0
        %v437 = vsub.f32 %v401, 1.0
        %v438 = vsub.f32 %v402, 1.0
        %v439 = vsel %vm431, %v399, %v435
        %v440 = vsel %vm432, %v400, %v436
        %v441 = vsel %vm433, %v401, %v437
        %v442 = vsel %vm434, %v402, %v438
        %v443 = vadd.f32 %v439, 1.0
        %v444 = vadd.f32 %v440, 1.0
        %v445 = vadd.f32 %v441, 1.0
        %v446 = vadd.f32 %v442, 1.0
        %v447 = vadd.f32 %v439, 2.0
        %v448 = vadd.f32 %v440, 2.0
        %v449 = vadd.f32 %v441, 2.0
        %v450 = vadd.f32 %v442, 2.0
        %v451 = vmul.f32 %v447, 676.5204
        %v452 = vmul.f32 %v448, 676.5204
        %v453 = vmul.f32 %v449, 676.5204
        %v454 = vmul.f32 %v450, 676.5204
        %v455 = vmul.f32 %v443, -1259.1392
        %v456 = vmul.f32 %v444, -1259.1392
        %v457 = vmul.f32 %v445, -1259.1392
        %v458 = vmul.f32 %v446, -1259.1392
        %v459 = vadd.f32 %v451, %v455
        %v460 = vadd.f32 %v452, %v456
        %v461 = vadd.f32 %v453, %v457
        %v462 = vadd.f32 %v454, %v458
        %v463 = vmul.f32 %v443, %v447
        %v464 = vmul.f32 %v444, %v448
        %v465 = vmul.f32 %v445, %v449
        %v466 = vmul.f32 %v446, %v450
        %v467 = vrcp.pop %v463
        %v468 = vmul.f32 %v463, %v467
        %v469 = vsub.f32 1.0, %v468
        %v470 = vmul.f32 %v467, %v469
        %v471 = vadd.f32 %v467, %v470
        %vm472 = vweird.f32 %v463
        %vm473 = vweird.f32 %v467
        %vm474 = vmor %vm472, %vm473
        %v475 = vsel %vm474, %v467, %v471
        %v476 = vand.u32 2147483647, %v463
        %vm477 = vcmp.eq.f32.partialorder %v476, 8.507059e+37
        %v478 = vand.u32 %v463, 2147483648
        %v479 = vor.u32 1.1754944e-38, %v478
        %v480 = vsel %vm477, %v479, %v475
        %v481 = vmul.f32 %v459, %v480
        %v482 = vrcp.pop %v464
        %v483 = vmul.f32 %v464, %v482
        %v484 = vsub.f32 1.0, %v483
        %v485 = vmul.f32 %v482, %v484
        %v486 = vadd.f32 %v482, %v485
        %vm487 = vweird.f32 %v464
        %vm488 = vweird.f32 %v482
        %vm489 = vmor %vm487, %vm488
        %v490 = vsel %vm489, %v482, %v486
        %v491 = vand.u32 2147483647, %v464
        %vm492 = vcmp.eq.f32.partialorder %v491, 8.507059e+37
        %v493 = vand.u32 %v464, 2147483648
        %v494 = vor.u32 1.1754944e-38, %v493
        %v495 = vsel %vm492, %v494, %v490
        %v496 = vmul.f32 %v460, %v495
        %v497 = vrcp.pop %v465
        %v498 = vmul.f32 %v465, %v497
        %v499 = vsub.f32 1.0, %v498
        %v500 = vmul.f32 %v497, %v499
        %v501 = vadd.f32 %v497, %v500
        %vm502 = vweird.f32 %v465
        %vm503 = vweird.f32 %v497
        %vm504 = vmor %vm502, %vm503
        %v505 = vsel %vm504, %v497, %v501
        %v506 = vand.u32 2147483647, %v465
        %vm507 = vcmp.eq.f32.partialorder %v506, 8.507059e+37
        %v508 = vand.u32 %v465, 2147483648
        %v509 = vor.u32 1.1754944e-38, %v508
        %v510 = vsel %vm507, %v509, %v505
        %v511 = vmul.f32 %v461, %v510
        %v512 = vrcp.pop %v466
        %v513 = vmul.f32 %v466, %v512
        %v514 = vsub.f32 1.0, %v513
        %v515 = vmul.f32 %v512, %v514
        %v516 = vadd.f32 %v512, %v515
        %vm517 = vweird.f32 %v466
        %vm518 = vweird.f32 %v512
        %vm519 = vmor %vm517, %vm518
        %v520 = vsel %vm519, %v512, %v516
        %v521 = vand.u32 2147483647, %v466
        %vm522 = vcmp.eq.f32.partialorder %v521, 8.507059e+37
        %v523 = vand.u32 %v466, 2147483648
        %v524 = vor.u32 1.1754944e-38, %v523
        %v525 = vsel %vm522, %v524, %v520
        %v526 = vmul.f32 %v462, %v525
        %v527 = vadd.f32 %v481, 1.0
        %v528 = vadd.f32 %v496, 1.0
        %v529 = vadd.f32 %v511, 1.0
        %v530 = vadd.f32 %v526, 1.0
        %v531 = vadd.f32 %v439, 3.0
        %v532 = vadd.f32 %v440, 3.0
        %v533 = vadd.f32 %v441, 3.0
        %v534 = vadd.f32 %v442, 3.0
        %v535 = vadd.f32 %v439, 4.0
        %v536 = vadd.f32 %v440, 4.0
        %v537 = vadd.f32 %v441, 4.0
        %v538 = vadd.f32 %v442, 4.0
        %v539 = vmul.f32 %v535, 771.3234
        %v540 = vmul.f32 %v536, 771.3234
        %v541 = vmul.f32 %v537, 771.3234
        %v542 = vmul.f32 %v538, 771.3234
        %v543 = vmul.f32 %v531, -176.61504
        %v544 = vmul.f32 %v532, -176.61504
        %v545 = vmul.f32 %v533, -176.61504
        %v546 = vmul.f32 %v534, -176.61504
        %v547 = vadd.f32 %v539, %v543
        %v548 = vadd.f32 %v540, %v544
        %v549 = vadd.f32 %v541, %v545
        %v550 = vadd.f32 %v542, %v546
        %v551 = vmul.f32 %v531, %v535
        %v552 = vmul.f32 %v532, %v536
        %v553 = vmul.f32 %v533, %v537
        %v554 = vmul.f32 %v534, %v538
        %v555 = vrcp.pop %v551
        %v556 = vmul.f32 %v551, %v555
        %v557 = vsub.f32 1.0, %v556
        %v558 = vmul.f32 %v555, %v557
        %v559 = vadd.f32 %v555, %v558
        %vm560 = vweird.f32 %v551
        %vm561 = vweird.f32 %v555
        %vm562 = vmor %vm560, %vm561
        %v563 = vsel %vm562, %v555, %v559
        %v564 = vand.u32 2147483647, %v551
        %vm565 = vcmp.eq.f32.partialorder %v564, 8.507059e+37
        %v566 = vand.u32 %v551, 2147483648
        %v567 = vor.u32 1.1754944e-38, %v566
        %v568 = vsel %vm565, %v567, %v563
        %v569 = vmul.f32 %v547, %v568
        %v570 = vrcp.pop %v552
        %v571 = vmul.f32 %v552, %v570
        %v572 = vsub.f32 1.0, %v571
        %v573 = vmul.f32 %v570, %v572
        %v574 = vadd.f32 %v570, %v573
        %vm575 = vweird.f32 %v552
        %vm576 = vweird.f32 %v570
        %vm577 = vmor %vm575, %vm576
        %v578 = vsel %vm577, %v570, %v574
        %v579 = vand.u32 2147483647, %v552
        %vm580 = vcmp.eq.f32.partialorder %v579, 8.507059e+37
        %v581 = vand.u32 %v552, 2147483648
        %v582 = vor.u32 1.1754944e-38, %v581
        %v583 = vsel %vm580, %v582, %v578
        %v584 = vmul.f32 %v548, %v583
        %v585 = vrcp.pop %v553
        %v586 = vmul.f32 %v553, %v585
        %v587 = vsub.f32 1.0, %v586
        %v588 = vmul.f32 %v585, %v587
        %v589 = vadd.f32 %v585, %v588
        %vm590 = vweird.f32 %v553
        %vm591 = vweird.f32 %v585
        %vm592 = vmor %vm590, %vm591
        %v593 = vsel %vm592, %v585, %v589
        %v594 = vand.u32 2147483647, %v553
        %vm595 = vcmp.eq.f32.partialorder %v594, 8.507059e+37
        %v596 = vand.u32 %v553, 2147483648
        %v597 = vor.u32 1.1754944e-38, %v596
        %v598 = vsel %vm595, %v597, %v593
        %v599 = vmul.f32 %v549, %v598
        %v600 = vrcp.pop %v554
        %v601 = vmul.f32 %v554, %v600
        %v602 = vsub.f32 1.0, %v601
        %v603 = vmul.f32 %v600, %v602
        %v604 = vadd.f32 %v600, %v603
        %vm605 = vweird.f32 %v554
        %vm606 = vweird.f32 %v600
        %vm607 = vmor %vm605, %vm606
        %v608 = vsel %vm607, %v600, %v604
        %v609 = vand.u32 2147483647, %v554
        %vm610 = vcmp.eq.f32.partialorder %v609, 8.507059e+37
        %v611 = vand.u32 %v554, 2147483648
        %v612 = vor.u32 1.1754944e-38, %v611
        %v613 = vsel %vm610, %v612, %v608
        %v614 = vmul.f32 %v550, %v613
        %v615 = vadd.f32 %v527, %v569
        %v616 = vadd.f32 %v528, %v584
        %v617 = vadd.f32 %v529, %v599
        %v618 = vadd.f32 %v530, %v614
        %v619 = vadd.f32 %v439, 5.0
        %v620 = vadd.f32 %v440, 5.0
        %v621 = vadd.f32 %v441, 5.0
        %v622 = vadd.f32 %v442, 5.0
        %v623 = vadd.f32 %v439, 6.0
        %v624 = vadd.f32 %v440, 6.0
        %v625 = vadd.f32 %v441, 6.0
        %v626 = vadd.f32 %v442, 6.0
        %v627 = vmul.f32 %v623, 12.507343
        %v628 = vmul.f32 %v624, 12.507343
        %v629 = vmul.f32 %v625, 12.507343
        %v630 = vmul.f32 %v626, 12.507343
        %v631 = vmul.f32 %v619, -0.1385711
        %v632 = vmul.f32 %v620, -0.1385711
        %v633 = vmul.f32 %v621, -0.1385711
        %v634 = vmul.f32 %v622, -0.1385711
        %v635 = vadd.f32 %v627, %v631
        %v636 = vadd.f32 %v628, %v632
        %v637 = vadd.f32 %v629, %v633
        %v638 = vadd.f32 %v630, %v634
        %v639 = vmul.f32 %v619, %v623
        %v640 = vmul.f32 %v620, %v624
        %v641 = vmul.f32 %v621, %v625
        %v642 = vmul.f32 %v622, %v626
        %v643 = vrcp.pop %v639
        %v644 = vmul.f32 %v639, %v643
        %v645 = vsub.f32 1.0, %v644
        %v646 = vmul.f32 %v643, %v645
        %v647 = vadd.f32 %v643, %v646
        %vm648 = vweird.f32 %v639
        %vm649 = vweird.f32 %v643
        %vm650 = vmor %vm648, %vm649
        %v651 = vsel %vm650, %v643, %v647
        %v652 = vand.u32 2147483647, %v639
        %vm653 = vcmp.eq.f32.partialorder %v652, 8.507059e+37
        %v654 = vand.u32 %v639, 2147483648
        %v655 = vor.u32 1.1754944e-38, %v654
        %v656 = vsel %vm653, %v655, %v651
        %v657 = vmul.f32 %v635, %v656
        %v658 = vrcp.pop %v640
        %v659 = vmul.f32 %v640, %v658
        %v660 = vsub.f32 1.0, %v659
        %v661 = vmul.f32 %v658, %v660
        %v662 = vadd.f32 %v658, %v661
        %vm663 = vweird.f32 %v640
        %vm664 = vweird.f32 %v658
        %vm665 = vmor %vm663, %vm664
        %v666 = vsel %vm665, %v658, %v662
        %v667 = vand.u32 2147483647, %v640
        %vm668 = vcmp.eq.f32.partialorder %v667, 8.507059e+37
        %v669 = vand.u32 %v640, 2147483648
        %v670 = vor.u32 1.1754944e-38, %v669
        %v671 = vsel %vm668, %v670, %v666
        %v672 = vmul.f32 %v636, %v671
        %v673 = vrcp.pop %v641
        %v674 = vmul.f32 %v641, %v673
        %v675 = vsub.f32 1.0, %v674
        %v676 = vmul.f32 %v673, %v675
        %v677 = vadd.f32 %v673, %v676
        %vm678 = vweird.f32 %v641
        %vm679 = vweird.f32 %v673
        %vm680 = vmor %vm678, %vm679
        %v681 = vsel %vm680, %v673, %v677
        %v682 = vand.u32 2147483647, %v641
        %vm683 = vcmp.eq.f32.partialorder %v682, 8.507059e+37
        %v684 = vand.u32 %v641, 2147483648
        %v685 = vor.u32 1.1754944e-38, %v684
        %v686 = vsel %vm683, %v685, %v681
        %v687 = vmul.f32 %v637, %v686
        %v688 = vrcp.pop %v642
        %v689 = vmul.f32 %v642, %v688
        %v690 = vsub.f32 1.0, %v689
        %v691 = vmul.f32 %v688, %v690
        %v692 = vadd.f32 %v688, %v691
        %vm693 = vweird.f32 %v642
        %vm694 = vweird.f32 %v688
        %vm695 = vmor %vm693, %vm694
        %v696 = vsel %vm695, %v688, %v692
        %v697 = vand.u32 2147483647, %v642
        %vm698 = vcmp.eq.f32.partialorder %v697, 8.507059e+37
        %v699 = vand.u32 %v642, 2147483648
        %v700 = vor.u32 1.1754944e-38, %v699
        %v701 = vsel %vm698, %v700, %v696
        %v702 = vmul.f32 %v638, %v701
        %v703 = vadd.f32 %v615, %v657
        %v704 = vadd.f32 %v616, %v672
        %v705 = vadd.f32 %v617, %v687
        %v706 = vadd.f32 %v618, %v702
        %v707 = vadd.f32 %v439, 7.0
        %v708 = vadd.f32 %v440, 7.0
        %v709 = vadd.f32 %v441, 7.0
        %v710 = vadd.f32 %v442, 7.0
        %v711 = vadd.f32 %v439, 8.0
        %v712 = vadd.f32 %v440, 8.0
        %v713 = vadd.f32 %v441, 8.0
        %v714 = vadd.f32 %v442, 8.0
        %v715 = vmul.f32 %v711, 9.984369e-06
        %v716 = vmul.f32 %v712, 9.984369e-06
        %v717 = vmul.f32 %v713, 9.984369e-06
        %v718 = vmul.f32 %v714, 9.984369e-06
        %v719 = vmul.f32 %v707, 1.5056327e-07
        %v720 = vmul.f32 %v708, 1.5056327e-07
        %v721 = vmul.f32 %v709, 1.5056327e-07
        %v722 = vmul.f32 %v710, 1.5056327e-07
        %v723 = vadd.f32 %v715, %v719
        %v724 = vadd.f32 %v716, %v720
        %v725 = vadd.f32 %v717, %v721
        %v726 = vadd.f32 %v718, %v722
        %v727 = vmul.f32 %v707, %v711
        %v728 = vmul.f32 %v708, %v712
        %v729 = vmul.f32 %v709, %v713
        %v730 = vmul.f32 %v710, %v714
        %v731 = vrcp.pop %v727
        %v732 = vmul.f32 %v727, %v731
        %v733 = vsub.f32 1.0, %v732
        %v734 = vmul.f32 %v731, %v733
        %v735 = vadd.f32 %v731, %v734
        %vm736 = vweird.f32 %v727
        %vm737 = vweird.f32 %v731
        %vm738 = vmor %vm736, %vm737
        %v739 = vsel %vm738, %v731, %v735
        %v740 = vand.u32 2147483647, %v727
        %vm741 = vcmp.eq.f32.partialorder %v740, 8.507059e+37
        %v742 = vand.u32 %v727, 2147483648
        %v743 = vor.u32 1.1754944e-38, %v742
        %v744 = vsel %vm741, %v743, %v739
        %v745 = vmul.f32 %v723, %v744
        %v746 = vrcp.pop %v728
        %v747 = vmul.f32 %v728, %v746
        %v748 = vsub.f32 1.0, %v747
        %v749 = vmul.f32 %v746, %v748
        %v750 = vadd.f32 %v746, %v749
        %vm751 = vweird.f32 %v728
        %vm752 = vweird.f32 %v746
        %vm753 = vmor %vm751, %vm752
        %v754 = vsel %vm753, %v746, %v750
        %v755 = vand.u32 2147483647, %v728
        %vm756 = vcmp.eq.f32.partialorder %v755, 8.507059e+37
        %v757 = vand.u32 %v728, 2147483648
        %v758 = vor.u32 1.1754944e-38, %v757
        %v759 = vsel %vm756, %v758, %v754
        %v760 = vmul.f32 %v724, %v759
        %v761 = vrcp.pop %v729
        %v762 = vmul.f32 %v729, %v761
        %v763 = vsub.f32 1.0, %v762
        %v764 = vmul.f32 %v761, %v763
        %v765 = vadd.f32 %v761, %v764
        %vm766 = vweird.f32 %v729
        %vm767 = vweird.f32 %v761
        %vm768 = vmor %vm766, %vm767
        %v769 = vsel %vm768, %v761, %v765
        %v770 = vand.u32 2147483647, %v729
        %vm771 = vcmp.eq.f32.partialorder %v770, 8.507059e+37
        %v772 = vand.u32 %v729, 2147483648
        %v773 = vor.u32 1.1754944e-38, %v772
        %v774 = vsel %vm771, %v773, %v769
        %v775 = vmul.f32 %v725, %v774
        %v776 = vrcp.pop %v730
        %v777 = vmul.f32 %v730, %v776
        %v778 = vsub.f32 1.0, %v777
        %v779 = vmul.f32 %v776, %v778
        %v780 = vadd.f32 %v776, %v779
        %vm781 = vweird.f32 %v730
        %vm782 = vweird.f32 %v776
        %vm783 = vmor %vm781, %vm782
        %v784 = vsel %vm783, %v776, %v780
        %v785 = vand.u32 2147483647, %v730
        %vm786 = vcmp.eq.f32.partialorder %v785, 8.507059e+37
        %v787 = vand.u32 %v730, 2147483648
        %v788 = vor.u32 1.1754944e-38, %v787
        %v789 = vsel %vm786, %v788, %v784
        %v790 = vmul.f32 %v726, %v789
        %v791 = vadd.f32 %v703, %v745
        %v792 = vadd.f32 %v704, %v760
        %v793 = vadd.f32 %v705, %v775
        %v794 = vadd.f32 %v706, %v790
        %v795 = vadd.f32 %v707, 0.5
        %v796 = vadd.f32 %v708, 0.5
        %v797 = vadd.f32 %v709, 0.5
        %v798 = vadd.f32 %v710, 0.5
        %v799 = vadd.f32 %v439, 0.5
        %v800 = vadd.f32 %v440, 0.5
        %v801 = vadd.f32 %v441, 0.5
        %v802 = vadd.f32 %v442, 0.5
        %v803 = vlog2.pop %v795
        %v804 = vmul.f32 %v803, 0.6931472
        %v805 = vlog2.pop %v796
        %v806 = vmul.f32 %v805, 0.6931472
        %v807 = vlog2.pop %v797
        %v808 = vmul.f32 %v807, 0.6931472
        %v809 = vlog2.pop %v798
        %v810 = vmul.f32 %v809, 0.6931472
        %v811 = vmul.f32 %v799, %v804
        %v812 = vmul.f32 %v800, %v806
        %v813 = vmul.f32 %v801, %v808
        %v814 = vmul.f32 %v802, %v810
        %v815 = vadd.f32 %v811, 0.9189385
        %v816 = vadd.f32 %v812, 0.9189385
        %v817 = vadd.f32 %v813, 0.9189385
        %v818 = vadd.f32 %v814, 0.9189385
        %v819 = vsub.f32 %v815, %v795
        %v820 = vsub.f32 %v816, %v796
        %v821 = vsub.f32 %v817, %v797
        %v822 = vsub.f32 %v818, %v798
        %v823 = vlog2.pop %v791
        %v824 = vmul.f32 %v823, 0.6931472
        %v825 = vlog2.pop %v792
        %v826 = vmul.f32 %v825, 0.6931472
        %v827 = vlog2.pop %v793
        %v828 = vmul.f32 %v827, 0.6931472
        %v829 = vlog2.pop %v794
        %v830 = vmul.f32 %v829, 0.6931472
        %v831 = vadd.f32 %v819, %v824
        %v832 = vadd.f32 %v820, %v826
        %v833 = vadd.f32 %v821, %v828
        %v834 = vadd.f32 %v822, %v830
        %v835 = vsub.f32 %v831, %v404
        %v836 = vsub.f32 %v832, %v406
        %v837 = vsub.f32 %v833, %v408
        %v838 = vsub.f32 %v834, %v410
        %v839 = vsel %vm431, %v835, %v831
        %v840 = vsel %vm432, %v836, %v832
        %v841 = vsel %vm433, %v837, %v833
        %v842 = vsel %vm434, %v838, %v834
        %v843 = vadd.f32 %v383, 1.0
        %v844 = vadd.f32 %v384, 1.0
        %v845 = vadd.f32 %v385, 1.0
        %v846 = vadd.f32 %v386, 1.0
        %v847 = vrcp.pop %v843
        %v848 = vrcp.pop %v844
        %v849 = vrcp.pop %v845
        %v850 = vrcp.pop %v846
        %v851 = vmul.f32 %v847, %v847
        %v852 = vmul.f32 %v848, %v848
        %v853 = vmul.f32 %v849, %v849
        %v854 = vmul.f32 %v850, %v850
        %v855 = vmul.f32 %v851, 0.0007936508
        %v856 = vmul.f32 %v852, 0.0007936508
        %v857 = vmul.f32 %v853, 0.0007936508
        %v858 = vmul.f32 %v854, 0.0007936508
        %v859 = vadd.f32 %v855, -0.0027777778
        %v860 = vadd.f32 %v856, -0.0027777778
        %v861 = vadd.f32 %v857, -0.0027777778
        %v862 = vadd.f32 %v858, -0.0027777778
        %v863 = vmul.f32 %v851, %v859
        %v864 = vmul.f32 %v852, %v860
        %v865 = vmul.f32 %v853, %v861
        %v866 = vmul.f32 %v854, %v862
        %v867 = vadd.f32 %v863, 0.083333336
        %v868 = vadd.f32 %v864, 0.083333336
        %v869 = vadd.f32 %v865, 0.083333336
        %v870 = vadd.f32 %v866, 0.083333336
        %v871 = vmul.f32 %v847, %v867
        %v872 = vmul.f32 %v848, %v868
        %v873 = vmul.f32 %v849, %v869
        %v874 = vmul.f32 %v850, %v870
        %v875 = vsub.f32 %v843, 0.5
        %v876 = vsub.f32 %v844, 0.5
        %v877 = vsub.f32 %v845, 0.5
        %v878 = vsub.f32 %v846, 0.5
        %v879 = vlog2.pop %v843
        %v880 = vmul.f32 %v879, 0.6931472
        %v881 = vlog2.pop %v844
        %v882 = vmul.f32 %v881, 0.6931472
        %v883 = vlog2.pop %v845
        %v884 = vmul.f32 %v883, 0.6931472
        %v885 = vlog2.pop %v846
        %v886 = vmul.f32 %v885, 0.6931472
        %v887 = vmul.f32 %v875, %v880
        %v888 = vmul.f32 %v876, %v882
        %v889 = vmul.f32 %v877, %v884
        %v890 = vmul.f32 %v878, %v886
        %v891 = vsub.f32 %v887, %v843
        %v892 = vsub.f32 %v888, %v844
        %v893 = vsub.f32 %v889, %v845
        %v894 = vsub.f32 %v890, %v846
        %v895 = vadd.f32 %v891, 0.9189385
        %v896 = vadd.f32 %v892, 0.9189385
        %v897 = vadd.f32 %v893, 0.9189385
        %v898 = vadd.f32 %v894, 0.9189385
        %v899 = vadd.f32 %v895, %v871
        %v900 = vadd.f32 %v896, %v872
        %v901 = vadd.f32 %v897, %v873
        %v902 = vadd.f32 %v898, %v874
        %v903 = vadd.f32 %v839, %v899
        %v904 = vadd.f32 %v840, %v900
        %v905 = vadd.f32 %v841, %v901
        %v906 = vadd.f32 %v842, %v902
        %v907 = vadd.f32 %v383, %v391
        %v908 = vadd.f32 %v384, %v392
        %v909 = vadd.f32 %v385, %v393
        %v910 = vadd.f32 %v386, %v394
        %v911 = vadd.f32 %v907, 1e-10
        %v912 = vadd.f32 %v908, 1e-10
        %v913 = vadd.f32 %v909, 1e-10
        %v914 = vadd.f32 %v910, 1e-10
        %v915 = vrcp.pop %v911
        %v916 = vrcp.pop %v912
        %v917 = vrcp.pop %v913
        %v918 = vrcp.pop %v914
        %v919 = vmul.f32 %v915, %v915
        %v920 = vmul.f32 %v916, %v916
        %v921 = vmul.f32 %v917, %v917
        %v922 = vmul.f32 %v918, %v918
        %v923 = vmul.f32 %v919, 0.0007936508
        %v924 = vmul.f32 %v920, 0.0007936508
        %v925 = vmul.f32 %v921, 0.0007936508
        %v926 = vmul.f32 %v922, 0.0007936508
        %v927 = vadd.f32 %v923, -0.0027777778
        %v928 = vadd.f32 %v924, -0.0027777778
        %v929 = vadd.f32 %v925, -0.0027777778
        %v930 = vadd.f32 %v926, -0.0027777778
        %v931 = vmul.f32 %v919, %v927
        %v932 = vmul.f32 %v920, %v928
        %v933 = vmul.f32 %v921, %v929
        %v934 = vmul.f32 %v922, %v930
        %v935 = vadd.f32 %v931, 0.083333336
        %v936 = vadd.f32 %v932, 0.083333336
        %v937 = vadd.f32 %v933, 0.083333336
        %v938 = vadd.f32 %v934, 0.083333336
        %v939 = vmul.f32 %v915, %v935
        %v940 = vmul.f32 %v916, %v936
        %v941 = vmul.f32 %v917, %v937
        %v942 = vmul.f32 %v918, %v938
        %v943 = vsub.f32 %v911, 0.5
        %v944 = vsub.f32 %v912, 0.5
        %v945 = vsub.f32 %v913, 0.5
        %v946 = vsub.f32 %v914, 0.5
        %v947 = vlog2.pop %v911
        %v948 = vmul.f32 %v947, 0.6931472
        %v949 = vlog2.pop %v912
        %v950 = vmul.f32 %v949, 0.6931472
        %v951 = vlog2.pop %v913
        %v952 = vmul.f32 %v951, 0.6931472
        %v953 = vlog2.pop %v914
        %v954 = vmul.f32 %v953, 0.6931472
        %v955 = vmul.f32 %v943, %v948
        %v956 = vmul.f32 %v944, %v950
        %v957 = vmul.f32 %v945, %v952
        %v958 = vmul.f32 %v946, %v954
        %v959 = vsub.f32 %v955, %v911
        %v960 = vsub.f32 %v956, %v912
        %v961 = vsub.f32 %v957, %v913
        %v962 = vsub.f32 %v958, %v914
        %v963 = vadd.f32 %v959, 0.9189385
        %v964 = vadd.f32 %v960, 0.9189385
        %v965 = vadd.f32 %v961, 0.9189385
        %v966 = vadd.f32 %v962, 0.9189385
        %v967 = vadd.f32 %v963, %v939
        %v968 = vadd.f32 %v964, %v940
        %v969 = vadd.f32 %v965, %v941
        %v970 = vadd.f32 %v966, %v942
        %v971 = vsub.f32 %v903, %v967
        %v972 = vsub.f32 %v904, %v968
        %v973 = vsub.f32 %v905, %v969
        %v974 = vsub.f32 %v906, %v970
        %v975 = vmul.f32 %v907, %v427
        %v976 = vmul.f32 %v908, %v428
        %v977 = vmul.f32 %v909, %v429
        %v978 = vmul.f32 %v910, %v430
        %v979 = vadd.f32 %v387, 1e-10
        %v980 = vadd.f32 %v388, 1e-10
        %v981 = vadd.f32 %v389, 1e-10
        %v982 = vadd.f32 %v390, 1e-10
        %v983 = vlog2.pop %v979
        %v984 = vmul.f32 %v983, 0.6931472
        %v985 = vlog2.pop %v980
        %v986 = vmul.f32 %v985, 0.6931472
        %v987 = vlog2.pop %v981
        %v988 = vmul.f32 %v987, 0.6931472
        %v989 = vlog2.pop %v982
        %v990 = vmul.f32 %v989, 0.6931472
        %v991 = vsub.f32 %v404, %v984
        %v992 = vsub.f32 %v406, %v986
        %v993 = vsub.f32 %v408, %v988
        %v994 = vsub.f32 %v410, %v990
        %v995 = vmul.f32 %v383, %v991
        %v996 = vmul.f32 %v384, %v992
        %v997 = vmul.f32 %v385, %v993
        %v998 = vmul.f32 %v386, %v994
        %v999 = vadd.f32 %v975, %v995
        %v1000 = vadd.f32 %v976, %v996
        %v1001 = vadd.f32 %v977, %v997
        %v1002 = vadd.f32 %v978, %v998
        %v1003 = vadd.f32 %v971, %v999
        %v1004 = vadd.f32 %v972, %v1000
        %v1005 = vadd.f32 %v973, %v1001
        %v1006 = vadd.f32 %v974, %v1002
        %v1007 = vsub.f32 1.0, %v395
        %v1008 = vsub.f32 1.0, %v396
        %v1009 = vsub.f32 1.0, %v397
        %v1010 = vsub.f32 1.0, %v398
        %v1011 = vadd.f32 %v1007, 1e-10
        %v1012 = vadd.f32 %v1008, 1e-10
        %v1013 = vadd.f32 %v1009, 1e-10
        %v1014 = vadd.f32 %v1010, 1e-10
        %v1015 = vlog2.pop %v1011
        %v1016 = vmul.f32 %v1015, 0.6931472
        %v1017 = vlog2.pop %v1012
        %v1018 = vmul.f32 %v1017, 0.6931472
        %v1019 = vlog2.pop %v1013
        %v1020 = vmul.f32 %v1019, 0.6931472
        %v1021 = vlog2.pop %v1014
        %v1022 = vmul.f32 %v1021, 0.6931472
        %v1023 = vsub.f32 %v1003, %v1016
        %v1024 = vsub.f32 %v1004, %v1018
        %v1025 = vsub.f32 %v1005, %v1020
        %v1026 = vsub.f32 %v1006, %v1022
        %v1027 = vsub.f32 0.0, %v391
        %v1028 = vsub.f32 0.0, %v392
        %v1029 = vsub.f32 0.0, %v393
        %v1030 = vsub.f32 0.0, %v394
        %v1031 = vmul.f32 %v1027, %v427
        %v1032 = vmul.f32 %v1028, %v428
        %v1033 = vmul.f32 %v1029, %v429
        %v1034 = vmul.f32 %v1030, %v430
        %v1035 = vmul.f32 %v1031, 1.442695
        %v1036 = vpow.pop %v1035
        %v1037 = vmul.f32 %v1032, 1.442695
        %v1038 = vpow.pop %v1037
        %v1039 = vmul.f32 %v1033, 1.442695
        %v1040 = vpow.pop %v1039
        %v1041 = vmul.f32 %v1034, 1.442695
        %v1042 = vpow.pop %v1041
        %v1043 = vmul.f32 %v1007, %v1036
        %v1044 = vmul.f32 %v1008, %v1038
        %v1045 = vmul.f32 %v1009, %v1040
        %v1046 = vmul.f32 %v1010, %v1042
        %v1047 = vadd.f32 %v395, %v1043
        %v1048 = vadd.f32 %v396, %v1044
        %v1049 = vadd.f32 %v397, %v1045
        %v1050 = vadd.f32 %v398, %v1046
        %v1051 = vadd.f32 %v1047, 1e-10
        %v1052 = vadd.f32 %v1048, 1e-10
        %v1053 = vadd.f32 %v1049, 1e-10
        %v1054 = vadd.f32 %v1050, 1e-10
        %v1055 = vlog2.pop %v1051
        %v1056 = vmul.f32 %v1055, 0.6931472
        %v1057 = vlog2.pop %v1052
        %v1058 = vmul.f32 %v1057, 0.6931472
        %v1059 = vlog2.pop %v1053
        %v1060 = vmul.f32 %v1059, 0.6931472
        %v1061 = vlog2.pop %v1054
        %v1062 = vmul.f32 %v1061, 0.6931472
        %v1063 = vsub.f32 0.0, %v1056
        %v1064 = vsub.f32 0.0, %v1058
        %v1065 = vsub.f32 0.0, %v1060
        %v1066 = vsub.f32 0.0, %v1062
        %vm1067 = vcmp.le.f32.partialorder %v383, 1e-08
        %vm1068 = vcmp.le.f32.partialorder %v384, 1e-08
        %vm1069 = vcmp.le.f32.partialorder %v385, 1e-08
        %vm1070 = vcmp.le.f32.partialorder %v386, 1e-08
        %v1071 = vsel %vm1067, %v1063, %v1023
        %v1072 = vsel %vm1068, %v1064, %v1024
        %v1073 = vsel %vm1069, %v1065, %v1025
        %v1074 = vsel %vm1070, %v1066, %v1026
        %v1075 = vld [vmem:[%s368] sm:$0xff]
        %v1076 = vld [vmem:[%s368 + $0x8] sm:$0xff]
        %v1077 = vadd.f32 %v1071, %v1073
        %v1078 = vadd.f32 %v1072, %v1074
        %v1079 = vadd.f32 %v1075, %v1077
        %v1080 = vadd.f32 %v1076, %v1078
        %1081 = vst [vmem:[%s368] sm:$0xff] %v1079
        %1082 = vst [vmem:[%s368 + $0x8] sm:$0xff] %v1080
        %s1083 = sand.u32 %s159, 1
        %s1084 = scalar_lea.sflag [#allocation4], %s1083
        %s1085 = sand.u32 %s159, 1
        %s1086 = smul.addr %s1085, 16
        %s1087 = scalar_lea.vmem [#allocation10], %s1086
        // Predicated region
        $region57: #{tpu_custom_call.1} parent=35 // pred_check
          %p1088 = pneg %p169
        $region58: #{tpu_custom_call.1} parent=35 // pred_check_branch
          %1090 = sbr.rel (%p1088) target = $region60
        $region59: #{tpu_custom_call.1} parent=35 // pred_region
          %1092 = vsyncadd %s1084, 0
          %s1093 = smul.addr %s31, 2
          %s1094 = smul.addr %s1093, 8
          %s1095 = scalar_lea.hbm %s4, %s1094
          %s1097 = sshll.u32 %s1087, 4
          %s1098 = int_to_ptr.vmem [resolvable:$true] %s1097
          %s1099 = sshll.u32 %s1095, 4
          %s1100 = int_to_ptr.hbm [resolvable:$true] %s1099
          %1102 = dma.vmem_to_hbm [thread:$0]  %s1098, 256, %s1100, %s1084
        $region60: #{tpu_custom_call.1} parent=35 // pred_fallthru
          _
      $region36: #{tpu_custom_call.1} parent=5 // pred_fallthru
        _
      %p1103 = scmp.le.s32.totalorder 2, %s22
      // Predicated region
      $region61: #{tpu_custom_call.1} parent=5 // pred_check
        %p1104 = pneg %p1103
      $region62: #{tpu_custom_call.1} parent=5 // pred_check_branch
        %1106 = sbr.rel (%p1104) target = $region64
      $region63: #{tpu_custom_call.1} parent=5 // pred_region
        %s1107 = ssub.s32 %s22, 2
        // Predicated region
        $region65: #{tpu_custom_call.1} parent=63 // pred_check
          %p1108 = pneg %p175
        $region66: #{tpu_custom_call.1} parent=63 // pred_check_branch
          %1110 = sbr.rel (%p1108) target = $region68
        $region67: #{tpu_custom_call.1} parent=63 // pred_region
          %s1111 = sand.u32 %s160, 1
          %s1112 = scalar_lea.sflag [#allocation4], %s1111
          %s1113 = sand.u32 %s160, 1
          %s1114 = smul.addr %s1113, 16
          %s1115 = scalar_lea.vmem [#allocation10], %s1114
          %1117 = dma.done %s1112, 256
        $region68: #{tpu_custom_call.1} parent=63 // pred_fallthru
          _
      $region64: #{tpu_custom_call.1} parent=5 // pred_fallthru
        _
    $region6: #{tpu_custom_call.1} parent=1 // loop_footer
      %s26 = sadd.s32 1, %s22
    $region7: #{tpu_custom_call.1} parent=1 // loop_footer_branch
      %21 = sbr.rel target = $region3
    $region8: #{tpu_custom_call.1} parent=1 // loop_exit
      _
    %1118 = vsyncpa [#allocation3], 1
    %s1119 = scalar_lea.sflag [#allocation3], 1
    %1120 = vsyncpa %s1119, 1
    %1121 = vsyncpa [#allocation6], 1
    %s1122 = scalar_lea.sflag [#allocation6], 1
    %1123 = vsyncpa %s1122, 1
    %1124 = vsyncpa [#allocation9], 1
    %s1125 = scalar_lea.sflag [#allocation9], 1
    %1126 = vsyncpa %s1125, 1
    %1127 = vsyncpa [#allocation4], 1
    %s1128 = scalar_lea.sflag [#allocation4], 1
    %1129 = vsyncpa %s1128, 1

</llo_original>
